<compile_context>
chip_gen: v5e
topology: v5e:2x2
jax: 0.10.0
libtpu: 0.0.40
codegen_flags: <defaults>
</compile_context>

<pallas_src>
import functools

import jax
import jax.numpy as jnp
from jax.experimental import pallas as pl
from jax.experimental.pallas import tpu as pltpu

_LANES = 128
_SUBLANES = 8
_BLOCK_ROWS = 8192        # 8192 x 128 f32 = 4 MiB per input per grid step.
_MAX_SPLITS = 2           # v7x has 2 TensorCores; cheap no-op on v5e/v6e.


def _round_up(x, m):
    return -(-x // m) * m


def _black_region_loss_kernel(gen_ref, tgt_ref, o_ref, acc_ref, *,
                              threshold, rows, block_rows, nb, kpc, mask_tail):
    c = pl.program_id(0)          # core-split index ("parallel")
    k = pl.program_id(1)          # row-block index within the split
    b = c * kpc + k               # global row-block index

    @pl.when(k == 0)
    def _init():
        acc_ref[...] = jnp.zeros_like(acc_ref)

    @pl.when(b < nb)              # skip overhang steps of the last split
    def _accumulate():
        t = tgt_ref[...].astype(jnp.float32)
        g = gen_ref[...].astype(jnp.float32)
        d = jnp.where(t < jnp.float32(threshold), jnp.abs(g - t),
                      jnp.float32(0.0))

        def _reduce(x):
            # (block_rows,128) -> (block_rows/8, 8, 128) is a pure re-tiling
            # (no data movement); the axis-0 sum is plain VPU adds into a
            # single (8,128) vreg accumulator -- no XLU reduce in the hot loop.
            return jnp.sum(
                x.reshape(block_rows // _SUBLANES, _SUBLANES, _LANES), axis=0)

        if mask_tail:
            # Only the last real block holds rows >= `rows` (OOB garbage);
            # all full blocks take the mask-free path.
            @pl.when(b != nb - 1)
            def _full_block():
                acc_ref[...] += _reduce(d)

            @pl.when(b == nb - 1)
            def _last_block():
                row_ids = jax.lax.broadcasted_iota(
                    jnp.int32, (block_rows, _LANES), 0)
                dm = jnp.where(b * block_rows + row_ids < rows, d,
                               jnp.float32(0.0))
                acc_ref[...] += _reduce(dm)
        else:
            acc_ref[...] += _reduce(d)

    @pl.when(k == kpc - 1)
    def _finalize():
        o_ref[...] = acc_ref[...]     # full (8,128) unmasked store


def black_region_loss(generated, target, threshold=0.1,
                      block_rows=_BLOCK_ROWS):
    """Pallas implementation of BlackRegionLoss.forward (returns a scalar)."""
    assert generated.shape == target.shape
    n_true = int(generated.size)
    threshold = float(threshold)

    g_flat = generated.reshape(-1)
    t_flat = target.reshape(-1)

    rows = n_true // _LANES
    tail = n_true - rows * _LANES

    # <128-element tail handled in plain JAX (no full-array pad of the inputs);
    # zero contribution semantics match the kernel's fused mask exactly.
    tail_sum = jnp.float32(0.0)
    if tail:
        tg = jax.lax.slice(g_flat, (rows * _LANES,), (n_true,)).astype(jnp.float32)
        tt = jax.lax.slice(t_flat, (rows * _LANES,), (n_true,)).astype(jnp.float32)
        tail_sum = jnp.sum(jnp.where(tt < jnp.float32(threshold),
                                     jnp.abs(tg - tt), jnp.float32(0.0)))

    if rows == 0:
        # Tiny (<128 element) input: nothing for the kernel to do.
        return tail_sum / jnp.float32(n_true)

    if tail:
        g_flat = jax.lax.slice(g_flat, (0,), (rows * _LANES,))
        t_flat = jax.lax.slice(t_flat, (0,), (rows * _LANES,))
    g2 = g_flat.reshape(rows, _LANES)
    t2 = t_flat.reshape(rows, _LANES)

    block_rows = min(int(block_rows), _round_up(rows, _SUBLANES))
    block_rows = _round_up(block_rows, _SUBLANES)
    nb = -(-rows // block_rows)                    # number of row-blocks
    n_splits = _MAX_SPLITS if nb >= _MAX_SPLITS else 1
    kpc = -(-nb // n_splits)                       # row-blocks per split
    mask_tail = (rows % block_rows != 0)

    def in_map(c, k):
        # Clamp so the DMA window never starts past the last real block; the
        # kernel itself skips the contribution of overhang (b >= nb) steps.
        return (jnp.minimum(c * kpc + k, nb - 1), 0)

    kernel = functools.partial(
        _black_region_loss_kernel,
        threshold=threshold, rows=rows, block_rows=block_rows,
        nb=nb, kpc=kpc, mask_tail=mask_tail)

    # Explicit scoped-VMEM request: 2 inputs x 2 pipeline buffers x block,
    # plus margin.  Portable across v5e/v6e/v7x default limits.
    itemsize = jnp.dtype(generated.dtype).itemsize
    block_bytes = block_rows * _LANES * itemsize
    vmem_bytes = int(2 * 2 * block_bytes * 1.3) + (4 << 20)

    partials = pl.pallas_call(
        kernel,
        out_shape=jax.ShapeDtypeStruct((n_splits * _SUBLANES, _LANES),
                                       jnp.float32),
        grid_spec=pltpu.PrefetchScalarGridSpec(
            num_scalar_prefetch=0,
            grid=(n_splits, kpc),
            in_specs=[
                pl.BlockSpec((block_rows, _LANES), in_map),
                pl.BlockSpec((block_rows, _LANES), in_map),
            ],
            out_specs=pl.BlockSpec((_SUBLANES, _LANES), lambda c, k: (c, 0)),
            scratch_shapes=[pltpu.VMEM((_SUBLANES, _LANES), jnp.float32)],
        ),
        compiler_params=pltpu.CompilerParams(
            dimension_semantics=("parallel", "arbitrary"),
            vmem_limit_bytes=vmem_bytes,
        ),
    )(g2, t2)

    # Tiny final cross-lane/sublane reduction + mean outside the hot loop.
    return (jnp.sum(partials) + tail_sum) / jnp.float32(n_true)


def _reference(generated, target, threshold=0.1):
    mask = (target < threshold).astype(jnp.float32)
    return jnp.mean(jnp.abs(generated * mask - target * mask))


if __name__ == "__main__":
    key = jax.random.PRNGKey(0)

    # Primary case is the NCHW shape the PyTorch module typically sees; the
    # extra cases exercise the JAX-tail (unaligned) path, a larger aligned
    # slab, and (via a small block_rows override) the multi-block / core-split
    # / ragged-last-block / overhang-step paths.
    cases = [
        ((2, 4, 16, 16), {}),
        ((2, 3, 17, 19), {}),
        ((2, 4, 192, 192), {}),
        ((2, 4, 40, 64), dict(block_rows=64)),
    ]
    for shape, kwargs in cases:
        kg, kt, key = jax.random.split(key, 3)
        generated = jax.random.uniform(kg, shape, dtype=jnp.float32)
        target = jax.random.uniform(kt, shape, dtype=jnp.float32)
        loss = jax.block_until_ready(
            black_region_loss(generated, target, threshold=0.1, **kwargs))
        ref = _reference(generated, target, threshold=0.1)
        assert jnp.allclose(loss, ref, rtol=1e-5, atol=1e-6), (shape, loss, ref)
    print("KERNEL_OK")
</pallas_src>

<mosaic_0001>
module attributes {stable_mosaic.version = 11 : i64} {
  func.func @_black_region_loss_kernel(%arg0: i32, %arg1: i32, %arg2: memref<16x128xf32, #tpu.memory_space<vmem>>, %arg3: memref<16x128xf32, #tpu.memory_space<vmem>>, %arg4: memref<8x128xf32, #tpu.memory_space<vmem>>, %arg5: memref<8x128xf32, #tpu.memory_space<vmem>>) attributes {dimension_semantics = [#tpu.dimension_semantics<parallel>, #tpu.dimension_semantics<arbitrary>], iteration_bounds = array<i64: 1, 1>, scalar_prefetch = 0 : i64, scratch_operands = 1 : i64, tpu.core_type = #tpu.core_type<tc>, window_params = [{transform_indices = @transform_0, window_bounds = array<i64: 16, 128>}, {transform_indices = @transform_1, window_bounds = array<i64: 16, 128>}, {transform_indices = @transform_2, window_bounds = array<i64: 8, 128>}]} {
    %c1_i32 = arith.constant 1 : i32
    %0 = arith.muli %arg0, %c1_i32 : i32
    %1 = arith.addi %0, %arg1 : i32
    %c0_i32 = arith.constant 0 : i32
    %2 = arith.cmpi eq, %arg1, %c0_i32 : i32
    %3 = arith.extui %2 : i1 to i32
    %c0_i32_0 = arith.constant 0 : i32
    %4 = arith.cmpi ne, %3, %c0_i32_0 : i32
    scf.if %4 {
      %cst = arith.constant 0.000000e+00 : f32
      %11 = vector.broadcast %cst : f32 to vector<8x128xf32>
      %c0 = arith.constant 0 : index
      %c0_5 = arith.constant 0 : index
      %12 = vector.load %arg5[%c0, %c0_5] : memref<8x128xf32, #tpu.memory_space<vmem>>, vector<8x128xf32>
      tpu.vector_store %arg5[%c0, %c0_5], %11 {strides = array<i32>} : memref<8x128xf32, #tpu.memory_space<vmem>>, vector<8x128xf32>,
    } else {
    }
    %c1_i32_1 = arith.constant 1 : i32
    %5 = arith.cmpi slt, %1, %c1_i32_1 : i32
    %6 = arith.extui %5 : i1 to i32
    %c0_i32_2 = arith.constant 0 : i32
    %7 = arith.cmpi ne, %6, %c0_i32_2 : i32
    scf.if %7 {
      %c0 = arith.constant 0 : index
      %c0_5 = arith.constant 0 : index
      %11 = vector.load %arg3[%c0, %c0_5] : memref<16x128xf32, #tpu.memory_space<vmem>>, vector<16x128xf32>
      %c0_6 = arith.constant 0 : index
      %c0_7 = arith.constant 0 : index
      %12 = vector.load %arg2[%c0_6, %c0_7] : memref<16x128xf32, #tpu.memory_space<vmem>>, vector<16x128xf32>
      %cst = arith.constant 1.000000e-01 : f32
      %13 = vector.broadcast %cst : f32 to vector<16x128xf32>
      %14 = arith.cmpf olt, %11, %13 : vector<16x128xf32>
      %15 = arith.subf %12, %11 : vector<16x128xf32>
      %16 = math.absf %15 : vector<16x128xf32>
      %cst_8 = arith.constant 0.000000e+00 : f32
      %17 = vector.broadcast %cst_8 : f32 to vector<16x128xf32>
      %18 = arith.select %14, %16, %17 : vector<16x128xi1>, vector<16x128xf32>
      %c0_9 = arith.constant 0 : index
      %c0_10 = arith.constant 0 : index
      %19 = vector.load %arg5[%c0_9, %c0_10] : memref<8x128xf32, #tpu.memory_space<vmem>>, vector<8x128xf32>
      %20 = vector.shape_cast %18 : vector<16x128xf32> to vector<2x8x128xf32>
      %cst_11 = arith.constant dense<0.000000e+00> : vector<8x128xf32>
      %21 = vector.multi_reduction <add>, %20, %cst_11 [0] : vector<2x8x128xf32> to vector<8x128xf32>
      %22 = arith.addf %19, %21 : vector<8x128xf32>
      %c0_12 = arith.constant 0 : index
      %c0_13 = arith.constant 0 : index
      %23 = vector.load %arg5[%c0_12, %c0_13] : memref<8x128xf32, #tpu.memory_space<vmem>>, vector<8x128xf32>
      tpu.vector_store %arg5[%c0_12, %c0_13], %22 {strides = array<i32>} : memref<8x128xf32, #tpu.memory_space<vmem>>, vector<8x128xf32>,
    } else {
    }
    %c0_i32_3 = arith.constant 0 : i32
    %8 = arith.cmpi eq, %arg1, %c0_i32_3 : i32
    %9 = arith.extui %8 : i1 to i32
    %c0_i32_4 = arith.constant 0 : i32
    %10 = arith.cmpi ne, %9, %c0_i32_4 : i32
    scf.if %10 {
      %c0 = arith.constant 0 : index
      %c0_5 = arith.constant 0 : index
      %11 = vector.load %arg5[%c0, %c0_5] : memref<8x128xf32, #tpu.memory_space<vmem>>, vector<8x128xf32>
      %c0_6 = arith.constant 0 : index
      %c0_7 = arith.constant 0 : index
      %12 = vector.load %arg4[%c0_6, %c0_7] : memref<8x128xf32, #tpu.memory_space<vmem>>, vector<8x128xf32>
      tpu.vector_store %arg4[%c0_6, %c0_7], %11 {strides = array<i32>} : memref<8x128xf32, #tpu.memory_space<vmem>>, vector<8x128xf32>,
    } else {
    }
    return
  }
  func.func @transform_0(%arg0: i32, %arg1: i32) -> (i32, i32) {
    %c1_i32 = arith.constant 1 : i32
    %0 = arith.muli %arg0, %c1_i32 : i32
    %1 = arith.addi %0, %arg1 : i32
    %c0_i32 = arith.constant 0 : i32
    %2 = arith.minsi %1, %c0_i32 : i32
    %c0_i32_0 = arith.constant 0 : i32
    %c0_i32_1 = arith.constant 0 : i32
    return %2, %c0_i32_0 : i32, i32
  }
  func.func @transform_1(%arg0: i32, %arg1: i32) -> (i32, i32) {
    %c1_i32 = arith.constant 1 : i32
    %0 = arith.muli %arg0, %c1_i32 : i32
    %1 = arith.addi %0, %arg1 : i32
    %c0_i32 = arith.constant 0 : i32
    %2 = arith.minsi %1, %c0_i32 : i32
    %c0_i32_0 = arith.constant 0 : i32
    %c0_i32_1 = arith.constant 0 : i32
    return %2, %c0_i32_0 : i32, i32
  }
  func.func @transform_2(%arg0: i32, %arg1: i32) -> (i32, i32) {
    %c0_i32 = arith.constant 0 : i32
    %c0_i32_0 = arith.constant 0 : i32
    return %arg0, %c0_i32 : i32, i32
  }
}

</mosaic_0001>

<llo_original>
// kernel: tpu_custom_call.1
$region0: #{tpu_custom_call.1}
  #allocation0 [shape = 'u32[]', space=smem, size = 0x4, offset = 0x4, fixed_abs, tag = 'smem constant byte address 0x4 - core index']
  #allocation1 [shape = 'u32[72,128]{1,0:T(1,128)}', space=vmem, size = 0x9000, scoped, tag = 'internal scratch']
  #allocation2 [shape = 'f32[8,128]{1,0:T(8,128)}', space=vmem, size = 0x1000, scoped, tag = 'scratch operand']
  %s0 = inlined_call_operand.hbm [shape: f32[16,128], index: 0, kind: input, shape index: {}]
  %s1 = inlined_call_operand.hbm [shape: f32[16,128], index: 1, kind: input, shape index: {}]
  %s2 = inlined_call_operand.hbm [shape: f32[8,128], index: 2, kind: output, shape index: {}]
  %s3 = sld [smem:[#allocation0]]
  $region38: #{tpu_custom_call.1} parent=0
    _
  %s5 = ssub.s32 1, %s3
  %s6 = scalar_select 0, %s5, %s3
  $region1: #{tpu_custom_call.1} parent=0
    #allocation3 [shape = 'u8[8192]{0}', space=vmem, size = 0x2000, scoped, tag = 'input window, operand 0, single buffered']
    #allocation4 [shape = 's32[1]{0}', space=sflag, size = 0x4, scoped, tag = 'scoped memory for tpu_custom_call.1']
    #allocation5 [shape = 's32[1]{0}', space=sflag, size = 0x4, scoped, tag = 'scoped memory for tpu_custom_call.1']
    #allocation6 [shape = 'u8[8192]{0}', space=vmem, size = 0x2000, scoped, tag = 'input window, operand 1, single buffered']
    #allocation7 [shape = 's32[1]{0}', space=sflag, size = 0x4, scoped, tag = 'scoped memory for tpu_custom_call.1']
    #allocation8 [shape = 'u8[4096]{0}', space=vmem, size = 0x1000, scoped, tag = 'output window, operand 0, single buffered']
    %7 = vsyncpa [#allocation4], 0
    %8 = vsyncpa [#allocation7], 0
    %9 = vsyncpa [#allocation5], 0
    // Predicated region
    $region2: #{tpu_custom_call.1} parent=1 // pred_check
      _
    $region3: #{tpu_custom_call.1} parent=1 // pred_check_branch
      %11 = sbr.rel (0) target = $region5
    $region4: #{tpu_custom_call.1} parent=1 // pred_region
      %s12 = sadd.s32 0, 0
      %p13 = scmp.lt.s32.totalorder %s12, 0
      %s14 = scalar_select %p13, %s12, 0
      %s15 = smul.u32 2, %s14
      %17 = vsyncadd [#allocation4], 0
      %s18 = smul.addr %s15, 8
      %s19 = scalar_lea.hbm %s0, %s18
      %s20 = sshll.u32 %s19, 4
      %s21 = int_to_ptr.hbm [resolvable:$true] %s20
      %s22 = sshll.u32 [#allocation3], 4
      %s23 = int_to_ptr.vmem [resolvable:$true] %s22
      %28 = dma.hbm_to_vmem [thread:$0]  %s21, 256, %s23, [#allocation4], 128, 128, 8
    $region5: #{tpu_custom_call.1} parent=1 // pred_fallthru
      _
    // Predicated region
    $region6: #{tpu_custom_call.1} parent=1 // pred_check
      _
    $region7: #{tpu_custom_call.1} parent=1 // pred_check_branch
      %30 = sbr.rel (0) target = $region9
    $region8: #{tpu_custom_call.1} parent=1 // pred_region
      %s31 = sadd.s32 0, 0
      %p32 = scmp.lt.s32.totalorder %s31, 0
      %s33 = scalar_select %p32, %s31, 0
      %s34 = smul.u32 2, %s33
      %36 = vsyncadd [#allocation7], 0
      %s37 = smul.addr %s34, 8
      %s38 = scalar_lea.hbm %s1, %s37
      %s39 = sshll.u32 %s38, 4
      %s40 = int_to_ptr.hbm [resolvable:$true] %s39
      %s41 = sshll.u32 [#allocation6], 4
      %s42 = int_to_ptr.vmem [resolvable:$true] %s41
      %47 = dma.hbm_to_vmem [thread:$0]  %s40, 256, %s42, [#allocation7], 128, 128, 8
    $region9: #{tpu_custom_call.1} parent=1 // pred_fallthru
      _
    // Predicated region
    $region10: #{tpu_custom_call.1} parent=1 // pred_check
      _
    $region11: #{tpu_custom_call.1} parent=1 // pred_check_branch
      %49 = sbr.rel (0) target = $region13
    $region12: #{tpu_custom_call.1} parent=1 // pred_region
      %51 = dma.done [#allocation4], 256
    $region13: #{tpu_custom_call.1} parent=1 // pred_fallthru
      _
    // Predicated region
    $region14: #{tpu_custom_call.1} parent=1 // pred_check
      _
    $region15: #{tpu_custom_call.1} parent=1 // pred_check_branch
      %53 = sbr.rel (0) target = $region17
    $region16: #{tpu_custom_call.1} parent=1 // pred_region
      %55 = dma.done [#allocation7], 256
    $region17: #{tpu_custom_call.1} parent=1 // pred_fallthru
      _
    %s56 = sadd.s32 0, 0
    %p57 = scmp.lt.s32.totalorder %s56, 0
    %s58 = scalar_select %p57, %s56, 0
    %s59 = smul.u32 2, %s58
    %s60 = sadd.s32 0, 0
    %p61 = scmp.lt.s32.totalorder %s60, 0
    %s62 = scalar_select %p61, %s60, 0
    %s63 = smul.u32 2, %s62
    %s64 = sadd.s32 0, 0
    %p65 = scmp.eq.s32.totalorder 0, 0
    // Predicated region
    $region18: #{tpu_custom_call.1} parent=1 // pred_check
      %p66 = pneg %p65
    $region19: #{tpu_custom_call.1} parent=1 // pred_check_branch
      %68 = sbr.rel (%p66) target = $region21
    $region20: #{tpu_custom_call.1} parent=1 // pred_region
      %69 = vst [vmem:[#allocation2] sm:$0xff] 0.0
    $region21: #{tpu_custom_call.1} parent=1 // pred_fallthru
      _
    %p70 = scmp.lt.s32.totalorder %s64, 1
    // Predicated region
    $region22: #{tpu_custom_call.1} parent=1 // pred_check
      %p71 = pneg %p70
    $region23: #{tpu_custom_call.1} parent=1 // pred_check_branch
      %73 = sbr.rel (%p71) target = $region25
    $region24: #{tpu_custom_call.1} parent=1 // pred_region
      %v74 = vld [vmem:[#allocation6] sm:$0xff]
      %v75 = vld [vmem:[#allocation6 + $0x8] sm:$0xff]
      %v76 = vld [vmem:[#allocation3] sm:$0xff]
      %v77 = vld [vmem:[#allocation3 + $0x8] sm:$0xff]
      %vm78 = vcmp.lt.f32.partialorder %v74, 0.1
      %vm79 = vcmp.lt.f32.partialorder %v75, 0.1
      %v80 = vsub.f32 %v76, %v74
      %v81 = vsub.f32 %v77, %v75
      %v82 = vand.u32 2147483647, %v80
      %v83 = vand.u32 2147483647, %v81
      %v84 = vsel %vm78, %v82, 0.0
      %v85 = vsel %vm79, %v83, 0.0
      %v86 = vld [vmem:[#allocation2] sm:$0xff]
      %v87 = vadd.f32 %v84, %v85
      %v88 = vadd.f32 %v86, %v87
      %89 = vst [vmem:[#allocation2] sm:$0xff] %v88
    $region25: #{tpu_custom_call.1} parent=1 // pred_fallthru
      _
    // Predicated region
    $region26: #{tpu_custom_call.1} parent=1 // pred_check
      %p90 = pneg %p65
    $region27: #{tpu_custom_call.1} parent=1 // pred_check_branch
      %92 = sbr.rel (%p90) target = $region29
    $region28: #{tpu_custom_call.1} parent=1 // pred_region
      %v93 = vld [vmem:[#allocation2] sm:$0xff]
      %94 = vst [vmem:[#allocation8] sm:$0xff] %v93
    $region29: #{tpu_custom_call.1} parent=1 // pred_fallthru
      _
    // Predicated region
    $region30: #{tpu_custom_call.1} parent=1 // pred_check
      _
    $region31: #{tpu_custom_call.1} parent=1 // pred_check_branch
      %96 = sbr.rel (0) target = $region33
    $region32: #{tpu_custom_call.1} parent=1 // pred_region
      %98 = vsyncadd [#allocation5], 0
      %s100 = sshll.u32 [#allocation8], 4
      %s101 = int_to_ptr.vmem [resolvable:$true] %s100
      %s102 = sshll.u32 %s2, 4
      %s103 = int_to_ptr.hbm [resolvable:$true] %s102
      %105 = dma.vmem_to_hbm [thread:$0]  %s101, 128, %s103, [#allocation5]
    $region33: #{tpu_custom_call.1} parent=1 // pred_fallthru
      _
    // Predicated region
    $region34: #{tpu_custom_call.1} parent=1 // pred_check
      _
    $region35: #{tpu_custom_call.1} parent=1 // pred_check_branch
      %107 = sbr.rel (0) target = $region37
    $region36: #{tpu_custom_call.1} parent=1 // pred_region
      %109 = dma.done [#allocation5], 128
    $region37: #{tpu_custom_call.1} parent=1 // pred_fallthru
      _
    %110 = vsyncpa [#allocation4], 1
    %111 = vsyncpa [#allocation7], 1
    %112 = vsyncpa [#allocation5], 1

</llo_original>
